<compile_context>
chip_gen: v7x
topology: tpu7x:2x2x1
jax: 0.10.0
libtpu: 0.0.40
codegen_flags: <defaults>
</compile_context>

<pallas_src>
import functools

import jax
import jax.numpy as jnp
from jax import lax
from jax.experimental import pallas as pl
from jax.experimental.pallas import tpu as pltpu

_LANES = 128


def _tbce_kernel(packed_ref, out_ref, acc_ref, *,
                 n_samples: int, neg_inv_decay: float, gamma: float,
                 block_rows: int, nb_per_core: int):
    c = pl.program_id(0)      # TensorCore split ("parallel")
    j = pl.program_id(1)      # reduction steps ("arbitrary")

    @pl.when(j == 0)
    def _():
        acc_ref[...] = jnp.zeros_like(acc_ref)

    l0 = packed_ref[0]        # (block_rows, 128) logits, class 0
    l1 = packed_ref[1]        # (block_rows, 128) logits, class 1
    td = packed_ref[2]        # (block_rows, 128) T_diff
    tgt = packed_ref[3]       # (block_rows, 128) target as float (0.0 / 1.0)

    # In-kernel validity mask from the global element index.
    base = (c * nb_per_core + j) * (block_rows * _LANES)
    row_ids = lax.broadcasted_iota(jnp.int32, (block_rows, _LANES), 0)
    lane_ids = lax.broadcasted_iota(jnp.int32, (block_rows, _LANES), 1)
    global_idx = base + row_ids * _LANES + lane_ids
    mask = (global_idx < n_samples).astype(jnp.float32)

    # Numerically-stable log-softmax over the 2 classes.
    m = jnp.maximum(l0, l1)
    z0 = l0 - m
    z1 = l1 - m
    log_denom = jnp.log(jnp.exp(z0) + jnp.exp(z1))

    is_pos = tgt > 0.5
    logp_t = jnp.where(is_pos, z1, z0) - log_denom     # log-softmax of true class
    p_t = jnp.exp(logp_t)                               # softmax prob of true class
    per_sample_loss = -logp_t                           # CE, reduction='none'

    # pos_weight = exp(-relu(T_diff)/decay); neg_weight = 1
    pos_w = jnp.exp(jnp.maximum(td, 0.0) * neg_inv_decay)
    w_t = jnp.where(is_pos, pos_w, 1.0)

    one_m_p = 1.0 - p_t
    if gamma == 1.0:
        focal = one_m_p
    elif gamma == 2.0:
        focal = one_m_p * one_m_p
    elif float(gamma) == int(gamma) and gamma >= 0.0:
        focal = one_m_p ** int(gamma)
    else:
        focal = one_m_p ** gamma

    acc_ref[...] += w_t * focal * per_sample_loss * mask

    @pl.when(j == pl.num_programs(1) - 1)
    def _():
        partial = jnp.sum(acc_ref[...])
        out_ref[...] = jnp.zeros_like(out_ref) + partial


def temporal_binary_cross_entropy(logit, target, t_diff,
                                  decay_coefficient: float = 20.0,
                                  gamma: float = 1.0,
                                  block_rows: int = 512,
                                  num_cores: int = 2):
    """logit: (N, 2) float32, target: (N,) int, t_diff: (N,) float32 -> scalar."""
    n = logit.shape[0]

    # Block sizing: lane-dense (rows, 128) blocks, rows a multiple of 8,
    # capped so the double-buffered footprint stays tiny (v7x-safe).
    rows_min = -(-n // _LANES)
    br = max(8, (min(int(block_rows), 2048) // 8) * 8)
    br = min(br, max(8, ((rows_min + 7) // 8) * 8))
    nb_per_core = max(1, -(-rows_min // (num_cores * br)))
    rows_total = num_cores * nb_per_core * br
    n_pad = rows_total * _LANES

    # Pack l0, l1, t_diff, target into one (4, rows_total, 128) stream.
    logit32 = logit.astype(jnp.float32)
    packed = jnp.concatenate(
        [logit32.T,                                   # (2, N)
         t_diff.astype(jnp.float32)[None, :],         # (1, N)
         target.astype(jnp.float32)[None, :]],        # (1, N)
        axis=0)                                       # (4, N)
    packed = jnp.pad(packed, ((0, 0), (0, n_pad - n)))
    packed = packed.reshape(4, rows_total, _LANES)

    kernel = functools.partial(
        _tbce_kernel,
        n_samples=n,
        neg_inv_decay=-1.0 / float(decay_coefficient),
        gamma=float(gamma),
        block_rows=br,
        nb_per_core=nb_per_core,
    )

    partials = pl.pallas_call(
        kernel,
        out_shape=jax.ShapeDtypeStruct((num_cores, 8, _LANES), jnp.float32),
        grid_spec=pltpu.PrefetchScalarGridSpec(
            num_scalar_prefetch=0,
            grid=(num_cores, nb_per_core),
            in_specs=[pl.BlockSpec(
                (4, br, _LANES),
                lambda c, j: (0, c * nb_per_core + j, 0))],
            out_specs=pl.BlockSpec((1, 8, _LANES), lambda c, j: (c, 0, 0)),
            scratch_shapes=[pltpu.VMEM((br, _LANES), jnp.float32)],
        ),
        compiler_params=pltpu.CompilerParams(
            dimension_semantics=("parallel", "arbitrary"),
            vmem_limit_bytes=64 << 20),
    )(packed)

    # Sum the per-core partials and apply the mean reduction.
    return jnp.sum(partials[:, 0, 0]) / n


def _reference(logit, target, t_diff, decay_coefficient=20.0, gamma=1.0):
    pos_weight = jnp.exp(-jnp.maximum(t_diff, 0.0) / decay_coefficient)
    neg_weight = jnp.ones_like(pos_weight)
    one_hot = jax.nn.one_hot(target, 2, dtype=logit.dtype)
    weight = jnp.stack([neg_weight, pos_weight], axis=1)
    probs = jax.nn.softmax(logit, axis=1)
    sample_weights = jnp.sum(one_hot * weight * (1.0 - probs) ** gamma, axis=1)
    logp = jax.nn.log_softmax(logit, axis=1)
    per_sample_loss = -jnp.take_along_axis(logp, target[:, None], axis=1)[:, 0]
    return jnp.mean(sample_weights * per_sample_loss)


if __name__ == "__main__":
    key = jax.random.PRNGKey(0)
    k1, k2, k3 = jax.random.split(key, 3)

    # Small shape consistent with the module: N samples, 2 classes.
    N = 8
    logit = jax.random.normal(k1, (N, 2), dtype=jnp.float32)
    target = jax.random.randint(k2, (N,), 0, 2, dtype=jnp.int32)
    t_diff = jax.random.uniform(k3, (N,), minval=-5.0, maxval=40.0,
                                dtype=jnp.float32)

    out = temporal_binary_cross_entropy(logit, target, t_diff,
                                        decay_coefficient=20.0, gamma=1.0)
    out = jax.block_until_ready(out)
    ref = _reference(logit, target, t_diff, 20.0, 1.0)
    assert jnp.allclose(out, ref, rtol=1e-5, atol=1e-5), (out, ref)

    # Second check: larger N exercising the in-kernel mask, both core
    # partials, and the integer-gamma (==2) fast path.
    k4, k5, k6 = jax.random.split(jax.random.PRNGKey(1), 3)
    N2 = 1000
    logit2 = jax.random.normal(k4, (N2, 2), dtype=jnp.float32)
    target2 = jax.random.randint(k5, (N2,), 0, 2, dtype=jnp.int32)
    t_diff2 = jax.random.uniform(k6, (N2,), minval=-5.0, maxval=40.0,
                                 dtype=jnp.float32)
    out2 = jax.block_until_ready(
        temporal_binary_cross_entropy(logit2, target2, t_diff2,
                                      decay_coefficient=20.0, gamma=2.0))
    ref2 = _reference(logit2, target2, t_diff2, 20.0, 2.0)
    assert jnp.allclose(out2, ref2, rtol=1e-5, atol=1e-5), (out2, ref2)

    print("KERNEL_OK")
</pallas_src>

<mosaic_0001>
module attributes {stable_mosaic.version = 11 : i64} {
  func.func @_tbce_kernel(%arg0: i32, %arg1: i32, %arg2: memref<4x8x128xf32, #tpu.memory_space<vmem>>, %arg3: memref<1x8x128xf32, #tpu.memory_space<vmem>>, %arg4: memref<8x128xf32, #tpu.memory_space<vmem>>) attributes {dimension_semantics = [#tpu.dimension_semantics<parallel>, #tpu.dimension_semantics<arbitrary>], iteration_bounds = array<i64: 2, 1>, scalar_prefetch = 0 : i64, scratch_operands = 1 : i64, tpu.core_type = #tpu.core_type<tc>, window_params = [{transform_indices = @transform_0, window_bounds = array<i64: 4, 8, 128>}, {transform_indices = @transform_1, window_bounds = array<i64: 1, 8, 128>}]} {
    %c0_i32 = arith.constant 0 : i32
    %0 = arith.cmpi eq, %arg1, %c0_i32 : i32
    %1 = arith.extui %0 : i1 to i32
    %c0_i32_0 = arith.constant 0 : i32
    %2 = arith.cmpi ne, %1, %c0_i32_0 : i32
    scf.if %2 {
      %cst_20 = arith.constant 0.000000e+00 : f32
      %57 = vector.broadcast %cst_20 : f32 to vector<8x128xf32>
      %c0_21 = arith.constant 0 : index
      %c0_22 = arith.constant 0 : index
      %58 = vector.load %arg4[%c0_21, %c0_22] : memref<8x128xf32, #tpu.memory_space<vmem>>, vector<8x128xf32>
      tpu.vector_store %arg4[%c0_21, %c0_22], %57 {strides = array<i32>} : memref<8x128xf32, #tpu.memory_space<vmem>>, vector<8x128xf32>,
    } else {
    }
    %c0 = arith.constant 0 : index
    %c0_1 = arith.constant 0 : index
    %c0_2 = arith.constant 0 : index
    %3 = vector.load %arg2[%c0, %c0_1, %c0_2] : memref<4x8x128xf32, #tpu.memory_space<vmem>>, vector<1x8x128xf32>
    %4 = vector.shape_cast %3 : vector<1x8x128xf32> to vector<8x128xf32>
    %c1 = arith.constant 1 : index
    %c0_3 = arith.constant 0 : index
    %c0_4 = arith.constant 0 : index
    %5 = vector.load %arg2[%c1, %c0_3, %c0_4] : memref<4x8x128xf32, #tpu.memory_space<vmem>>, vector<1x8x128xf32>
    %6 = vector.shape_cast %5 : vector<1x8x128xf32> to vector<8x128xf32>
    %c2 = arith.constant 2 : index
    %c0_5 = arith.constant 0 : index
    %c0_6 = arith.constant 0 : index
    %7 = vector.load %arg2[%c2, %c0_5, %c0_6] : memref<4x8x128xf32, #tpu.memory_space<vmem>>, vector<1x8x128xf32>
    %8 = vector.shape_cast %7 : vector<1x8x128xf32> to vector<8x128xf32>
    %c3 = arith.constant 3 : index
    %c0_7 = arith.constant 0 : index
    %c0_8 = arith.constant 0 : index
    %9 = vector.load %arg2[%c3, %c0_7, %c0_8] : memref<4x8x128xf32, #tpu.memory_space<vmem>>, vector<1x8x128xf32>
    %10 = vector.shape_cast %9 : vector<1x8x128xf32> to vector<8x128xf32>
    %c1_i32 = arith.constant 1 : i32
    %11 = arith.muli %arg0, %c1_i32 : i32
    %12 = arith.addi %11, %arg1 : i32
    %c1024_i32 = arith.constant 1024 : i32
    %13 = arith.muli %12, %c1024_i32 : i32
    %14 = tpu.iota {dimensions = array<i32: 0>} : vector<8x128xi32>
    %15 = tpu.iota {dimensions = array<i32: 1>} : vector<8x128xi32>
    %c128_i32 = arith.constant 128 : i32
    %16 = vector.broadcast %c128_i32 : i32 to vector<8x128xi32>
    %17 = arith.muli %14, %16 : vector<8x128xi32>
    %18 = vector.broadcast %13 : i32 to vector<8x128xi32>
    %19 = arith.addi %18, %17 : vector<8x128xi32>
    %20 = arith.addi %19, %15 : vector<8x128xi32>
    %c8_i32 = arith.constant 8 : i32
    %21 = vector.broadcast %c8_i32 : i32 to vector<8x128xi32>
    %22 = arith.cmpi slt, %20, %21 : vector<8x128xi32>
    %23 = arith.extui %22 : vector<8x128xi1> to vector<8x128xi32>
    %24 = arith.sitofp %23 : vector<8x128xi32> to vector<8x128xf32>
    %25 = arith.maximumf %4, %6 : vector<8x128xf32>
    %26 = arith.subf %4, %25 : vector<8x128xf32>
    %27 = arith.subf %6, %25 : vector<8x128xf32>
    %28 = math.exp %26 : vector<8x128xf32>
    %29 = math.exp %27 : vector<8x128xf32>
    %30 = arith.addf %28, %29 : vector<8x128xf32>
    %31 = math.log %30 : vector<8x128xf32>
    %cst = arith.constant 5.000000e-01 : f32
    %32 = vector.broadcast %cst : f32 to vector<8x128xf32>
    %33 = arith.cmpf ogt, %10, %32 : vector<8x128xf32>
    %34 = arith.select %33, %27, %26 : vector<8x128xi1>, vector<8x128xf32>
    %35 = arith.subf %34, %31 : vector<8x128xf32>
    %36 = math.exp %35 : vector<8x128xf32>
    %cst_9 = arith.constant 0.000000e+00 : f32
    %37 = vector.broadcast %cst_9 : f32 to vector<8x128xf32>
    %38 = arith.subf %37, %35 : vector<8x128xf32>
    %cst_10 = arith.constant 0.000000e+00 : f32
    %39 = vector.broadcast %cst_10 : f32 to vector<8x128xf32>
    %40 = arith.maximumf %8, %39 : vector<8x128xf32>
    %cst_11 = arith.constant -5.000000e-02 : f32
    %41 = vector.broadcast %cst_11 : f32 to vector<8x128xf32>
    %42 = arith.mulf %40, %41 : vector<8x128xf32>
    %43 = math.exp %42 : vector<8x128xf32>
    %cst_12 = arith.constant 1.000000e+00 : f32
    %44 = vector.broadcast %cst_12 : f32 to vector<8x128xf32>
    %45 = arith.select %33, %43, %44 : vector<8x128xi1>, vector<8x128xf32>
    %cst_13 = arith.constant 1.000000e+00 : f32
    %46 = vector.broadcast %cst_13 : f32 to vector<8x128xf32>
    %47 = arith.subf %46, %36 : vector<8x128xf32>
    %c0_14 = arith.constant 0 : index
    %c0_15 = arith.constant 0 : index
    %48 = vector.load %arg4[%c0_14, %c0_15] : memref<8x128xf32, #tpu.memory_space<vmem>>, vector<8x128xf32>
    %49 = arith.mulf %45, %47 : vector<8x128xf32>
    %50 = arith.mulf %49, %38 : vector<8x128xf32>
    %51 = arith.mulf %50, %24 : vector<8x128xf32>
    %52 = arith.addf %48, %51 : vector<8x128xf32>
    %c0_16 = arith.constant 0 : index
    %c0_17 = arith.constant 0 : index
    %53 = vector.load %arg4[%c0_16, %c0_17] : memref<8x128xf32, #tpu.memory_space<vmem>>, vector<8x128xf32>
    tpu.vector_store %arg4[%c0_16, %c0_17], %52 {strides = array<i32>} : memref<8x128xf32, #tpu.memory_space<vmem>>, vector<8x128xf32>,
    %c0_i32_18 = arith.constant 0 : i32
    %54 = arith.cmpi eq, %arg1, %c0_i32_18 : i32
    %55 = arith.extui %54 : i1 to i32
    %c0_i32_19 = arith.constant 0 : i32
    %56 = arith.cmpi ne, %55, %c0_i32_19 : i32
    scf.if %56 {
      %c0_20 = arith.constant 0 : index
      %c0_21 = arith.constant 0 : index
      %57 = vector.load %arg4[%c0_20, %c0_21] : memref<8x128xf32, #tpu.memory_space<vmem>>, vector<8x128xf32>
      %58 = vector.shape_cast %57 : vector<8x128xf32> to vector<1x8x128xf32>
      %cst_22 = arith.constant dense<0.000000e+00> : vector<1xf32>
      %59 = vector.multi_reduction <add>, %58, %cst_22 [1, 2] : vector<1x8x128xf32> to vector<1xf32>
      %60 = vector.shape_cast %59 : vector<1xf32> to vector<1x1x1xf32>
      %61 = vector.extract %60[0, 0, 0] : f32 from vector<1x1x1xf32>
      %cst_23 = arith.constant 0.000000e+00 : f32
      %62 = vector.broadcast %cst_23 : f32 to vector<1x8x128xf32>
      %63 = vector.broadcast %61 : f32 to vector<1x8x128xf32>
      %64 = arith.addf %62, %63 : vector<1x8x128xf32>
      %c0_24 = arith.constant 0 : index
      %c0_25 = arith.constant 0 : index
      %c0_26 = arith.constant 0 : index
      %65 = vector.load %arg3[%c0_24, %c0_25, %c0_26] : memref<1x8x128xf32, #tpu.memory_space<vmem>>, vector<1x8x128xf32>
      tpu.vector_store %arg3[%c0_24, %c0_25, %c0_26], %64 {strides = array<i32>} : memref<1x8x128xf32, #tpu.memory_space<vmem>>, vector<1x8x128xf32>,
    } else {
    }
    return
  }
  func.func @transform_0(%arg0: i32, %arg1: i32) -> (i32, i32, i32) {
    %c1_i32 = arith.constant 1 : i32
    %0 = arith.muli %arg0, %c1_i32 : i32
    %1 = arith.addi %0, %arg1 : i32
    %c0_i32 = arith.constant 0 : i32
    %c0_i32_0 = arith.constant 0 : i32
    %c0_i32_1 = arith.constant 0 : i32
    return %c0_i32, %1, %c0_i32_0 : i32, i32, i32
  }
  func.func @transform_1(%arg0: i32, %arg1: i32) -> (i32, i32, i32) {
    %c0_i32 = arith.constant 0 : i32
    %c0_i32_0 = arith.constant 0 : i32
    %c0_i32_1 = arith.constant 0 : i32
    return %arg0, %c0_i32, %c0_i32_0 : i32, i32, i32
  }
}

</mosaic_0001>

<llo_original>
// kernel: tpu_custom_call.1
$region0: #{tpu_custom_call.1}
  #allocation0 [shape = 'u32[]', space=smem, size = 0x4, offset = 0x4, fixed_abs, tag = 'smem constant byte address 0x4 - core index']
  #allocation1 [shape = 'u32[144,128]{1,0:T(1,128)}', space=vmem, size = 0x12000, scoped, tag = 'internal scratch']
  #allocation2 [shape = 'f32[8,128]{1,0:T(8,128)}', space=vmem, size = 0x1000, scoped, tag = 'scratch operand']
  %s0 = inlined_call_operand.hbm [shape: f32[4,16,128], index: 0, kind: input, shape index: {}]
  %s1 = inlined_call_operand.hbm [shape: f32[2,8,128], index: 1, kind: output, shape index: {}]
  %s2 = sld [smem:[#allocation0]]
  $region49: #{tpu_custom_call.1} parent=0
    _
  %s4 = ssub.s32 1, %s2
  %s5 = scalar_select 0, %s4, %s2
  $region1: #{tpu_custom_call.1} parent=0
    #allocation3 [shape = 'u8[32768]{0}', space=vmem, size = 0x8000, scoped, tag = 'input window, operand 0']
    #allocation4 [shape = 's32[2]{0}', space=sflag, size = 0x8, scoped, tag = 'scoped memory for tpu_custom_call.1']
    #allocation5 [shape = 's32[2]{0}', space=sflag, size = 0x8, scoped, tag = 'scoped memory for tpu_custom_call.1']
    #allocation6 [shape = 'u8[8192]{0}', space=vmem, size = 0x2000, scoped, tag = 'output window, operand 0']
    %6 = vsyncpa [#allocation4], 0
    %s7 = scalar_lea.sflag [#allocation4], 1
    %8 = vsyncpa %s7, 0
    %9 = vsyncpa [#allocation5], 0
    %s10 = scalar_lea.sflag [#allocation5], 1
    %11 = vsyncpa %s10, 0
    loop: start=0, step=1, limit=4
    $region2: #{tpu_custom_call.1} parent=1 // loop_pre_header
      _
    $region3: #{tpu_custom_call.1} parent=1 // loop_header
      %s13 = sphi 0, %s17
      %p14 = scmp.ge.s32.totalorder %s13, 4
      %s20 = sphi 0, %s32
      %s21 = sphi 0, %s28
      %s22 = sphi 0, %s20
      %s23 = sphi 0, %s21
      %s24 = sphi 0, %s22
      %s25 = sphi 0, %s23
      %s37 = sphi 0, %s39
      %s40 = sphi 0, %s37
      %s41 = sphi 0, %s40
      %s57 = sphi 0, %s41
      %s63 = sphi 0, %s65
      %s66 = sphi 0, %s63
      %s67 = sphi 0, %s66
      %s83 = sphi 0, %s67
    $region4: #{tpu_custom_call.1} parent=1 // loop_header_branch
      %16 = sbr.rel (%p14) target = $region8
    $region5: #{tpu_custom_call.1} parent=1 // loop_body
      %s18 = ssub.s32 %s13, 1
      %s19 = ssub.s32 %s13, 2
      %s26 = sadd.s32 1, %s21
      %p27 = scmp.ge.s32.totalorder %s26, 1
      %s28 = scalar_select %p27, 0, %s26
      %s29 = sadd.s32 1, %s20
      %s30 = scalar_select %p27, %s29, %s20
      %p31 = scmp.ge.s32.totalorder %s30, 2
      %s32 = scalar_select %p31, 0, %s30
      %s33 = sadd.s32 %s20, %s21
      %s34 = sadd.s32 %s32, %s28
      %s35 = ssub.s32 %s33, %s34
      %p36 = scmp.eq.s32.totalorder %s35, 0
      %s38 = sadd.s32 %s37, 1
      %s39 = scalar_select %p36, %s37, %s38
      %p42 = pneg %p36
      %p43 = scmp.eq.s32.totalorder %s13, 1
      %p44 = por %p42, %p43
      %p45 = scmp.ne.s32.totalorder %s37, %s40
      %p46 = scmp.eq.s32.totalorder %s13, 0
      %p47 = por %p45, %p46
      %p48 = scmp.ne.s32.totalorder %s37, %s40
      %p49 = scmp.eq.s32.totalorder %s18, 1
      %p50 = por %p48, %p49
      %p51 = scmp.ne.s32.totalorder %s40, %s41
      %p52 = scmp.eq.s32.totalorder %s18, 0
      %p53 = por %p51, %p52
      %p54 = scmp.ne.s32.totalorder %s40, %s41
      %p55 = scmp.eq.s32.totalorder %s19, 1
      %p56 = por %p54, %p55
      %p58 = scmp.ne.s32.totalorder %s41, %s57
      %p59 = scmp.eq.s32.totalorder %s19, 0
      %p60 = por %p58, %p59
      %s61 = ssub.s32 %s20, %s32
      %p62 = scmp.eq.s32.totalorder %s61, 0
      %s64 = sadd.s32 %s63, 1
      %s65 = scalar_select %p62, %s63, %s64
      %p68 = pneg %p62
      %p69 = scmp.eq.s32.totalorder %s13, 1
      %p70 = por %p68, %p69
      %p71 = scmp.ne.s32.totalorder %s63, %s66
      %p72 = scmp.eq.s32.totalorder %s13, 0
      %p73 = por %p71, %p72
      %p74 = scmp.ne.s32.totalorder %s63, %s66
      %p75 = scmp.eq.s32.totalorder %s18, 1
      %p76 = por %p74, %p75
      %p77 = scmp.ne.s32.totalorder %s66, %s67
      %p78 = scmp.eq.s32.totalorder %s18, 0
      %p79 = por %p77, %p78
      %p80 = scmp.ne.s32.totalorder %s66, %s67
      %p81 = scmp.eq.s32.totalorder %s19, 1
      %p82 = por %p80, %p81
      %p84 = scmp.ne.s32.totalorder %s67, %s83
      %p85 = scmp.eq.s32.totalorder %s19, 0
      %p86 = por %p84, %p85
      %p87 = scmp.le.s32.totalorder 1, %s13
      %p88 = scmp.lt.s32.totalorder %s13, 3
      %p89 = pnand %p87, %p88
      %p90 = pneg %p89
      // Predicated region
      $region9: #{tpu_custom_call.1} parent=5 // pred_check
        _
      $region10: #{tpu_custom_call.1} parent=5 // pred_check_branch
        %92 = sbr.rel (%p89) target = $region12
      $region11: #{tpu_custom_call.1} parent=5 // pred_region
        %s93 = ssub.s32 %s13, 1
      $region12: #{tpu_custom_call.1} parent=5 // pred_fallthru
        _
      %p94 = scmp.lt.s32.totalorder %s13, 2
      // Predicated region
      $region13: #{tpu_custom_call.1} parent=5 // pred_check
        %p95 = pneg %p94
      $region14: #{tpu_custom_call.1} parent=5 // pred_check_branch
        %97 = sbr.rel (%p95) target = $region16
      $region15: #{tpu_custom_call.1} parent=5 // pred_region
        // Predicated region
        $region17: #{tpu_custom_call.1} parent=15 // pred_check
          %p98 = pneg %p47
        $region18: #{tpu_custom_call.1} parent=15 // pred_check_branch
          %100 = sbr.rel (%p98) target = $region20
        $region19: #{tpu_custom_call.1} parent=15 // pred_region
          %s101 = sand.u32 %s37, 1
          %s102 = scalar_lea.sflag [#allocation4], %s101
          %s103 = sand.u32 %s37, 1
          %s104 = smul.addr %s103, 32
          %s105 = scalar_lea.vmem [#allocation3], %s104
          %s106 = sadd.s32 %s20, %s21
          %s108 = ssub.s32 512, 512
          %109 = vsyncadd %s102, %s108
          %s110 = smul.addr %s106, 128
          %s111 = scalar_lea.hbm %s0, %s110
          %s112 = sshll.u32 %s105, 4
          %s113 = int_to_ptr.vmem [resolvable:$true] %s112
          %118 = dma.hbm_to_vmem [thread:$0]  %s111, 512, %s113, %s102, 256, 128, 8
        $region20: #{tpu_custom_call.1} parent=15 // pred_fallthru
          _
      $region16: #{tpu_custom_call.1} parent=5 // pred_fallthru
        _
      %p119 = scmp.le.s32.totalorder 1, %s13
      %p120 = scmp.lt.s32.totalorder %s13, 3
      %p121 = pnand %p119, %p120
      %p122 = pneg %p121
      // Predicated region
      $region21: #{tpu_custom_call.1} parent=5 // pred_check
        _
      $region22: #{tpu_custom_call.1} parent=5 // pred_check_branch
        %124 = sbr.rel (%p121) target = $region24
      $region23: #{tpu_custom_call.1} parent=5 // pred_region
        %s125 = ssub.s32 %s13, 1
        %s126 = sand.u32 %s40, 1
        %s127 = scalar_lea.sflag [#allocation4], %s126
        %s128 = sand.u32 %s40, 1
        %s129 = smul.addr %s128, 32
        %s130 = scalar_lea.vmem [#allocation3], %s129
        // Predicated region
        $region25: #{tpu_custom_call.1} parent=23 // pred_check
          %p131 = pneg %p53
        $region26: #{tpu_custom_call.1} parent=23 // pred_check_branch
          %133 = sbr.rel (%p131) target = $region28
        $region27: #{tpu_custom_call.1} parent=23 // pred_region
          %134 = dma.done %s127, 512
        $region28: #{tpu_custom_call.1} parent=23 // pred_fallthru
          _
        %s135 = sand.u32 %s40, 1
        %s136 = scalar_lea.sflag [#allocation4], %s135
        %s137 = sand.u32 %s40, 1
        %s138 = smul.addr %s137, 32
        %s139 = scalar_lea.vmem [#allocation3], %s138
        %p140 = pneg %p53
        %p141 = pneg %p50
        %p142 = pneg %p79
        %p143 = pneg %p76
        %s144 = sand.u32 %s66, 1
        %s145 = scalar_lea.sflag [#allocation5], %s144
        %s146 = sand.u32 %s66, 1
        %s147 = smul.addr %s146, 8
        %s148 = scalar_lea.vmem [#allocation6], %s147
        %s149 = sadd.s32 %s22, %s23
        %p150 = scmp.eq.s32.totalorder %s23, 0
        // Predicated region
        $region29: #{tpu_custom_call.1} parent=23 // pred_check
          %p151 = pneg %p150
        $region30: #{tpu_custom_call.1} parent=23 // pred_check_branch
          %153 = sbr.rel (%p151) target = $region32
        $region31: #{tpu_custom_call.1} parent=23 // pred_region
          %154 = vst [vmem:[#allocation2] sm:$0xff] 0.0
        $region32: #{tpu_custom_call.1} parent=23 // pred_fallthru
          _
        %v155 = vld [vmem:[%s130] sm:$0xff]
        %s156 = scalar_lea.vmem %s130, 8 [#allocation3]
        %v157 = vld [vmem:[%s156] sm:$0xff]
        %s158 = scalar_lea.vmem %s130, 16 [#allocation3]
        %v159 = vld [vmem:[%s158] sm:$0xff]
        %s160 = scalar_lea.vmem %s130, 24 [#allocation3]
        %v161 = vld [vmem:[%s160] sm:$0xff]
        %s162 = sadd.s32 %s22, %s23
        %s163 = smul.u32 %s162, 1024
        %v164 = vlaneseq
        %v165 = vshrl.u32 %v164, 7
        %v166 = vlaneseq
        %v167 = vand.u32 %v166, 127
        %v168 = vmul.u32 %v165, 128
        %v169 = vstv %s163
        %v170 = vadd.s32 %v169, %v168
        %v171 = vadd.s32 %v170, %v167
        %vm172 = vcmp.lt.s32.totalorder %v171, 8
        %v173 = vsel %vm172, 1, 0
        %v174 = vcvt.s32.f32 %v173
        %v175 = vmax.f32 %v155, %v157
        %v176 = vsub.f32 %v155, %v175
        %v177 = vsub.f32 %v157, %v175
        %v178 = vmul.f32 %v176, 1.442695
        %v179 = vpow.pop %v178
        %v180 = vmul.f32 %v177, 1.442695
        %v181 = vpow.pop %v180
        %v182 = vadd.f32 %v179, %v181
        %v183 = vlog2.pop %v182
        %v184 = vmul.f32 %v183, 0.6931472
        %vm185 = vcmp.gt.f32.partialorder %v161, 0.5
        %v186 = vsel %vm185, %v177, %v176
        %v187 = vsub.f32 %v186, %v184
        %v188 = vmul.f32 %v187, 1.442695
        %v189 = vpow.pop %v188
        %v190 = vsub.f32 0.0, %v187
        %v191 = vmax.f32 %v159, 0.0
        %v192 = vmul.f32 %v191, -0.05
        %v193 = vmul.f32 %v192, 1.442695
        %v194 = vpow.pop %v193
        %v195 = vsel %vm185, %v194, 1.0
        %v196 = vsub.f32 1.0, %v189
        %v197 = vld [vmem:[#allocation2] sm:$0xff]
        %v198 = vmul.f32 %v195, %v196
        %v199 = vmul.f32 %v198, %v190
        %v200 = vmul.f32 %v199, %v174
        %v201 = vadd.f32 %v197, %v200
        %202 = vst [vmem:[#allocation2] sm:$0xff] %v201
        // Predicated region
        $region33: #{tpu_custom_call.1} parent=23 // pred_check
          %p203 = pneg %p150
        $region34: #{tpu_custom_call.1} parent=23 // pred_check_branch
          %205 = sbr.rel (%p203) target = $region36
        $region35: #{tpu_custom_call.1} parent=23 // pred_region
          %v206 = vld [vmem:[#allocation2] sm:$0xff]
          %207 = vadd.xlane.f32.xlu0 %v206
          %v208 = vpop.xlane.xlu0 %207
          %v209 = vrot.slane %v208, 4
          %v210 = vadd.f32 %v208, %v209
          %v211 = vrot.slane %v210, 2
          %v212 = vadd.f32 %v210, %v211
          %v213 = vrot.slane %v212, 1
          %v214 = vadd.f32 %v212, %v213
          %s215 = vtos %v214
          %v216 = vstv %s215
          %v217 = vadd.f32 %v216, 0.0
          %218 = vst [vmem:[%s148] sm:$0xff] %v217
        $region36: #{tpu_custom_call.1} parent=23 // pred_fallthru
          _
        %s219 = sand.u32 %s66, 1
        %s220 = scalar_lea.sflag [#allocation5], %s219
        %s221 = sand.u32 %s66, 1
        %s222 = smul.addr %s221, 8
        %s223 = scalar_lea.vmem [#allocation6], %s222
        // Predicated region
        $region37: #{tpu_custom_call.1} parent=23 // pred_check
          %p224 = pneg %p76
        $region38: #{tpu_custom_call.1} parent=23 // pred_check_branch
          %226 = sbr.rel (%p224) target = $region40
        $region39: #{tpu_custom_call.1} parent=23 // pred_region
          %s228 = ssub.s32 128, 128
          %229 = vsyncadd %s220, %s228
          %s230 = smul.addr %s22, 128
          %s231 = scalar_lea.hbm %s1, %s230
          %s233 = sshll.u32 %s223, 4
          %s234 = int_to_ptr.vmem [resolvable:$true] %s233
          %236 = dma.vmem_to_hbm [thread:$0]  %s234, 128, %s231, %s220
        $region40: #{tpu_custom_call.1} parent=23 // pred_fallthru
          _
      $region24: #{tpu_custom_call.1} parent=5 // pred_fallthru
        _
      %p237 = scmp.le.s32.totalorder 2, %s13
      // Predicated region
      $region41: #{tpu_custom_call.1} parent=5 // pred_check
        %p238 = pneg %p237
      $region42: #{tpu_custom_call.1} parent=5 // pred_check_branch
        %240 = sbr.rel (%p238) target = $region44
      $region43: #{tpu_custom_call.1} parent=5 // pred_region
        %s241 = ssub.s32 %s13, 2
        // Predicated region
        $region45: #{tpu_custom_call.1} parent=43 // pred_check
          %p242 = pneg %p82
        $region46: #{tpu_custom_call.1} parent=43 // pred_check_branch
          %244 = sbr.rel (%p242) target = $region48
        $region47: #{tpu_custom_call.1} parent=43 // pred_region
          %s245 = sand.u32 %s67, 1
          %s246 = scalar_lea.sflag [#allocation5], %s245
          %s247 = sand.u32 %s67, 1
          %s248 = smul.addr %s247, 8
          %s249 = scalar_lea.vmem [#allocation6], %s248
          %250 = dma.done %s246, 128
        $region48: #{tpu_custom_call.1} parent=43 // pred_fallthru
          _
      $region44: #{tpu_custom_call.1} parent=5 // pred_fallthru
        _
    $region6: #{tpu_custom_call.1} parent=1 // loop_footer
      %s17 = sadd.s32 1, %s13
    $region7: #{tpu_custom_call.1} parent=1 // loop_footer_branch
      %12 = sbr.rel target = $region3
    $region8: #{tpu_custom_call.1} parent=1 // loop_exit
      _
    %251 = vsyncpa [#allocation4], 1
    %s252 = scalar_lea.sflag [#allocation4], 1
    %253 = vsyncpa %s252, 1
    %254 = vsyncpa [#allocation5], 1
    %s255 = scalar_lea.sflag [#allocation5], 1
    %256 = vsyncpa %s255, 1

</llo_original>
